<compile_context>
chip_gen: v7x
topology: tpu7x:2x2x1
jax: 0.10.0
libtpu: 0.0.40
codegen_flags: <defaults>
</compile_context>

<pallas_src>
import functools

import jax
import jax.numpy as jnp
from jax.experimental import pallas as pl
from jax.experimental.pallas import tpu as pltpu


def _round_up(a, b):
    return (a + b - 1) // b * b


def _fold_shape(F):
    """Pick (F_pad, fold) so fold*F_pad is a multiple of 128 (lane-dense)."""
    if F >= 128:
        return _round_up(F, 128), 1
    F_pad = 1
    while F_pad < F:          # next power-of-two divisor of 128 that is >= F
        F_pad *= 2
    return F_pad, 128 // F_pad


# --------------------------------------------------------------------------- #
# Kernel body
# --------------------------------------------------------------------------- #
def diff_attention_kernel(x_ref, y_ref, cw_ref, w1_ref, b1_ref, w2_ref,
                          xo_ref, yo_ref, *, approx_recip):
    # Elementwise math in f32 regardless of the HBM dtype (v5e has no bf16 VPU/EUP).
    x = x_ref[...].astype(jnp.float32)          # (TILE_R, FOLD*F)
    y = y_ref[...].astype(jnp.float32)

    # in_transform == 'abs'
    diff = jnp.abs(x - y)

    # Conv1d(in=3, out=1, k=1) on stacked (diff, x, y): w0*diff + w1*x + w2*y.
    # The conv bias is folded (by linearity) into b1_ref, added after fc1.
    feature = cw_ref[0] * diff + cw_ref[1] * x + cw_ref[2] * y

    # fc1 (no bias) on the folded block-diagonal weight; MXU, f32 accumulate.
    h = jnp.dot(feature.astype(w1_ref.dtype), w1_ref[...],
                preferred_element_type=jnp.float32)
    h = jnp.maximum(h + b1_ref[...], 0.0)       # (TILE_R, FOLD*H), conv bias + ReLU

    # fc2 (no bias)
    att = jnp.dot(h.astype(w2_ref.dtype), w2_ref[...],
                  preferred_element_type=jnp.float32)   # (TILE_R, FOLD*F)

    # out_transform == 'sigmoid'; approx reciprocal rides the otherwise-idle EUP.
    att = pl.reciprocal(1.0 + jnp.exp(-att), approx=approx_recip)

    # keep_dim=True: elementwise gating of both inputs.
    xo_ref[...] = (x * att).astype(xo_ref.dtype)
    yo_ref[...] = (y * att).astype(yo_ref.dtype)


# --------------------------------------------------------------------------- #
# Parameter folding (hoisted out of the per-call path; build once per param set)
# --------------------------------------------------------------------------- #
def fold_params(conv_w, conv_b, fc1_w, fc2_w, *, weight_dtype=None):
    """Precompute the lane-folded, block-diagonal weights used by the kernel.

    conv_w: (3,)  Conv1d(3, 1, kernel_size=1).weight squeezed
    conv_b: (1,)  Conv1d bias
    fc1_w:  (H, F) torch Linear weight (no bias)
    fc2_w:  (F, H) torch Linear weight (no bias)
    """
    H, F = fc1_w.shape
    F_pad, fold = _fold_shape(F)
    FW, HW = fold * F_pad, fold * H
    weight_dtype = jnp.dtype(fc1_w.dtype if weight_dtype is None else weight_dtype)

    w1 = fc1_w.astype(jnp.float32)
    w2 = fc2_w.astype(jnp.float32)
    if F_pad != F:   # zero-pad dead feature columns/rows (keeps stores full-lane)
        w1 = jnp.pad(w1, ((0, 0), (0, F_pad - F)))
        w2 = jnp.pad(w2, ((0, F_pad - F), (0, 0)))

    eye = jnp.eye(fold, dtype=jnp.float32)
    w1_f = jnp.kron(eye, w1.T).astype(weight_dtype)      # (FW, HW)
    w2_f = jnp.kron(eye, w2.T).astype(weight_dtype)      # (HW, FW)

    # Conv bias folded through the linear fc1: fc1(feat + b) = fc1(feat) + b*rowsum(W1)
    b1 = conv_b.astype(jnp.float32)[0] * fc1_w.astype(jnp.float32).sum(axis=1)  # (H,)
    b1_f = jnp.tile(b1, fold)[None, :]                   # (1, HW), kept in f32

    return dict(cw=conv_w.astype(jnp.float32), w1=w1_f, b1=b1_f, w2=w2_f,
                F=F, H=H, F_pad=F_pad, fold=fold, FW=FW, HW=HW)


# --------------------------------------------------------------------------- #
# Wrapper
# --------------------------------------------------------------------------- #
def diff_attention(x, y, params, *, block_rows=None):
    """x, y: (B, F) in the dtype you want at the HBM boundary (f32 or bf16).
    params: output of fold_params().  block_rows: optional folded-row tile size."""
    B, F = x.shape
    assert F == params["F"], "feature dim mismatch with folded params"
    fold, F_pad = params["fold"], params["F_pad"]
    FW, HW = params["FW"], params["HW"]
    io_dtype = jnp.dtype(x.dtype)
    itemsize = io_dtype.itemsize

    # ---- wrapper-side layout: free (metadata-only) when B % fold == 0 and
    #      F divides 128; otherwise a minimal pad is paid (documented cost). ----
    x_f, y_f = x, y
    if F_pad != F:
        x_f = jnp.pad(x_f, ((0, 0), (0, F_pad - F)))
        y_f = jnp.pad(y_f, ((0, 0), (0, F_pad - F)))
    b_rem = B % fold
    if b_rem:  # tiny pad so the lane-fold reshape stays a free row-major view
        x_f = jnp.pad(x_f, ((0, fold - b_rem), (0, 0)))
        y_f = jnp.pad(y_f, ((0, fold - b_rem), (0, 0)))
    rows = x_f.shape[0] // fold
    x_f = x_f.reshape(rows, FW)                 # free row-major reshape
    y_f = y_f.reshape(rows, FW)

    # ---- batch tile: ~1 MiB per stream buffer, >=2 grid steps when possible,
    #      aligned to sublane packing, capped so 4 streams x 2 buffers <= 16 MiB. ----
    align = 16 if itemsize <= 2 else 8
    if block_rows is None:
        block_rows = max(align, (1 << 20) // (FW * itemsize))
    tile_r = min(block_rows, max(pl.cdiv(rows, 2), align))
    tile_r = _round_up(tile_r, align)
    max_tile = max(align, ((16 << 20) // (8 * FW * itemsize)) // align * align)
    tile_r = min(tile_r, max_tile)
    grid = (pl.cdiv(rows, tile_r),)             # ragged last block handled by Pallas

    w_itemsize = jnp.dtype(params["w1"].dtype).itemsize
    n_elems = rows * FW
    cost = pl.CostEstimate(
        flops=int(4 * rows * FW * HW + 10 * n_elems),
        transcendentals=int(n_elems),
        bytes_accessed=int(4 * n_elems * itemsize + 2 * FW * HW * w_itemsize),
    )

    kernel = functools.partial(diff_attention_kernel,
                               approx_recip=(io_dtype == jnp.bfloat16))

    xo, yo = pl.pallas_call(
        kernel,
        out_shape=(jax.ShapeDtypeStruct((rows, FW), x.dtype),
                   jax.ShapeDtypeStruct((rows, FW), y.dtype)),
        grid=grid,
        in_specs=[
            pl.BlockSpec((tile_r, FW), lambda i: (i, 0)),         # x  (batch-tiled)
            pl.BlockSpec((tile_r, FW), lambda i: (i, 0)),         # y  (batch-tiled)
            pl.BlockSpec(memory_space=pltpu.MemorySpace.SMEM),    # conv weights (3,)
            pl.BlockSpec((FW, HW), lambda i: (0, 0)),             # fc1 (resident)
            pl.BlockSpec((1, HW), lambda i: (0, 0)),              # folded bias (resident)
            pl.BlockSpec((HW, FW), lambda i: (0, 0)),             # fc2 (resident)
        ],
        out_specs=(
            pl.BlockSpec((tile_r, FW), lambda i: (i, 0)),
            pl.BlockSpec((tile_r, FW), lambda i: (i, 0)),
        ),
        compiler_params=pltpu.CompilerParams(
            dimension_semantics=("parallel",)),                   # 2 TCs on v7x
        cost_estimate=cost,
    )(x_f, y_f, params["cw"], params["w1"], params["b1"], params["w2"])

    # ---- un-fold: free reshape; slice only if something was padded ----
    xo = xo.reshape(rows * fold, F_pad)
    yo = yo.reshape(rows * fold, F_pad)
    if rows * fold != B or F_pad != F:
        xo = xo[:B, :F]
        yo = yo[:B, :F]
    return xo, yo


# --------------------------------------------------------------------------- #
# Pure-JAX reference (mirrors the PyTorch forward with abs/sigmoid/aggregate)
# --------------------------------------------------------------------------- #
def reference(x, y, conv_w, conv_b, fc1_w, fc2_w):
    diff = jnp.abs(x - y)
    feature = conv_w[0] * diff + conv_w[1] * x + conv_w[2] * y + conv_b[0]
    h = jnp.maximum(feature @ fc1_w.T, 0.0)
    att = jax.nn.sigmoid(h @ fc2_w.T)
    return x * att, y * att


if __name__ == "__main__":
    # Module hyperparameters (synthetic, deterministic init).
    num_feature = 32
    diff_ratio = 4
    hidden = num_feature // diff_ratio          # 8
    batch = 72                                  # folds to 18 lane-dense rows:
                                                # exercises a ragged last block (grid=2)

    key = jax.random.PRNGKey(0)
    kx, ky, kc, kb, k1, k2 = jax.random.split(key, 6)

    x = jax.random.normal(kx, (batch, num_feature), dtype=jnp.float32)
    y = jax.random.normal(ky, (batch, num_feature), dtype=jnp.float32)

    conv_w = jax.random.normal(kc, (3,), dtype=jnp.float32) * 0.5    # Conv1d(3,1,1).weight
    conv_b = jax.random.normal(kb, (1,), dtype=jnp.float32) * 0.1    # Conv1d bias
    fc1_w = jax.random.normal(k1, (hidden, num_feature), dtype=jnp.float32) * 0.2
    fc2_w = jax.random.normal(k2, (num_feature, hidden), dtype=jnp.float32) * 0.2

    x_gold, y_gold = reference(x, y, conv_w, conv_b, fc1_w, fc2_w)

    # f32 verification path; folded weights built once (hoisted out of the call).
    params32 = fold_params(conv_w, conv_b, fc1_w, fc2_w)
    xo, yo = diff_attention(x, y, params32)
    jax.block_until_ready((xo, yo))
    assert xo.shape == x.shape and yo.shape == y.shape
    assert jnp.allclose(xo, x_gold, atol=1e-4, rtol=1e-4)
    assert jnp.allclose(yo, y_gold, atol=1e-4, rtol=1e-4)

    # bf16 HBM-format fast path (valid on v5e/v6e/v7x): inputs are already bf16,
    # so no wrapper-side cast pass is paid; loose numeric check.
    params16 = fold_params(conv_w, conv_b, fc1_w, fc2_w, weight_dtype=jnp.bfloat16)
    xo16, yo16 = diff_attention(x.astype(jnp.bfloat16), y.astype(jnp.bfloat16), params16)
    jax.block_until_ready((xo16, yo16))
    err = jnp.maximum(jnp.max(jnp.abs(xo16.astype(jnp.float32) - x_gold)),
                      jnp.max(jnp.abs(yo16.astype(jnp.float32) - y_gold)))
    assert float(err) < 0.15, float(err)

    print("KERNEL_OK")
</pallas_src>

<mosaic_0001>
module attributes {stable_mosaic.version = 11 : i64} {
  func.func @diff_attention_kernel(%arg0: i32, %arg1: memref<16x128xf32, #tpu.memory_space<vmem>>, %arg2: memref<16x128xf32, #tpu.memory_space<vmem>>, %arg3: memref<3xf32, #tpu.memory_space<smem>>, %arg4: memref<128x32xf32, #tpu.memory_space<vmem>>, %arg5: memref<1x32xf32, #tpu.memory_space<vmem>>, %arg6: memref<32x128xf32, #tpu.memory_space<vmem>>, %arg7: memref<16x128xf32, #tpu.memory_space<vmem>>, %arg8: memref<16x128xf32, #tpu.memory_space<vmem>>) attributes {dimension_semantics = [#tpu.dimension_semantics<parallel>], iteration_bounds = array<i64: 2>, scalar_prefetch = 0 : i64, scratch_operands = 0 : i64, tpu.core_type = #tpu.core_type<tc>, window_params = [{transform_indices = @transform_0, window_bounds = array<i64: 16, 128>}, {transform_indices = @transform_1, window_bounds = array<i64: 16, 128>}, {transform_indices = @transform_2, window_bounds = array<i64: 3>}, {pipeline_mode = #tpu.pipeline_mode<synchronous>, transform_indices = @transform_3, window_bounds = array<i64: 128, 32>}, {pipeline_mode = #tpu.pipeline_mode<synchronous>, transform_indices = @transform_4, window_bounds = array<i64: 1, 32>}, {pipeline_mode = #tpu.pipeline_mode<synchronous>, transform_indices = @transform_5, window_bounds = array<i64: 32, 128>}, {transform_indices = @transform_6, window_bounds = array<i64: 16, 128>}, {transform_indices = @transform_7, window_bounds = array<i64: 16, 128>}]} {
    %c0 = arith.constant 0 : index
    %c0_0 = arith.constant 0 : index
    %0 = vector.load %arg1[%c0, %c0_0] : memref<16x128xf32, #tpu.memory_space<vmem>>, vector<16x128xf32>
    %c0_1 = arith.constant 0 : index
    %c0_2 = arith.constant 0 : index
    %1 = vector.load %arg2[%c0_1, %c0_2] : memref<16x128xf32, #tpu.memory_space<vmem>>, vector<16x128xf32>
    %2 = arith.subf %0, %1 : vector<16x128xf32>
    %3 = math.absf %2 : vector<16x128xf32>
    %c0_3 = arith.constant 0 : index
    %4 = memref.load %arg3[%c0_3] : memref<3xf32, #tpu.memory_space<smem>>
    %5 = vector.broadcast %4 : f32 to vector<16x128xf32>
    %6 = arith.mulf %5, %3 : vector<16x128xf32>
    %c1 = arith.constant 1 : index
    %7 = memref.load %arg3[%c1] : memref<3xf32, #tpu.memory_space<smem>>
    %8 = vector.broadcast %7 : f32 to vector<16x128xf32>
    %9 = arith.mulf %8, %0 : vector<16x128xf32>
    %10 = arith.addf %6, %9 : vector<16x128xf32>
    %c2 = arith.constant 2 : index
    %11 = memref.load %arg3[%c2] : memref<3xf32, #tpu.memory_space<smem>>
    %12 = vector.broadcast %11 : f32 to vector<16x128xf32>
    %13 = arith.mulf %12, %1 : vector<16x128xf32>
    %14 = arith.addf %10, %13 : vector<16x128xf32>
    %c0_4 = arith.constant 0 : index
    %c0_5 = arith.constant 0 : index
    %15 = vector.load %arg4[%c0_4, %c0_5] : memref<128x32xf32, #tpu.memory_space<vmem>>, vector<128x32xf32>
    %cst = arith.constant dense<0.000000e+00> : vector<16x32xf32>
    %16 = tpu.matmul %14, %15, %cst {dimension_numbers = #tpu.dot_dimension_numbers<[1], [0], [0], [1], [0, 0, 1, 1], [], []>} : vector<16x128xf32>, vector<128x32xf32>, vector<16x32xf32> -> vector<16x32xf32>
    %c0_6 = arith.constant 0 : index
    %c0_7 = arith.constant 0 : index
    %17 = vector.load %arg5[%c0_6, %c0_7] : memref<1x32xf32, #tpu.memory_space<vmem>>, vector<1x32xf32>
    %18 = vector.broadcast %17 : vector<1x32xf32> to vector<16x32xf32>
    %19 = arith.addf %16, %18 : vector<16x32xf32>
    %cst_8 = arith.constant 0.000000e+00 : f32
    %20 = vector.broadcast %cst_8 : f32 to vector<16x32xf32>
    %21 = arith.maximumf %19, %20 : vector<16x32xf32>
    %c0_9 = arith.constant 0 : index
    %c0_10 = arith.constant 0 : index
    %22 = vector.load %arg6[%c0_9, %c0_10] : memref<32x128xf32, #tpu.memory_space<vmem>>, vector<32x128xf32>
    %cst_11 = arith.constant dense<0.000000e+00> : vector<16x128xf32>
    %23 = tpu.matmul %21, %22, %cst_11 {dimension_numbers = #tpu.dot_dimension_numbers<[1], [0], [0], [1], [0, 0, 1, 1], [], []>} : vector<16x32xf32>, vector<32x128xf32>, vector<16x128xf32> -> vector<16x128xf32>
    %cst_12 = arith.constant 0.000000e+00 : f32
    %24 = vector.broadcast %cst_12 : f32 to vector<16x128xf32>
    %25 = arith.subf %24, %23 : vector<16x128xf32>
    %26 = math.exp %25 : vector<16x128xf32>
    %cst_13 = arith.constant 1.000000e+00 : f32
    %27 = vector.broadcast %cst_13 : f32 to vector<16x128xf32>
    %28 = arith.addf %27, %26 : vector<16x128xf32>
    %29 = tpu.reciprocal %28 : vector<16x128xf32> -> vector<16x128xf32>
    %30 = arith.mulf %0, %29 : vector<16x128xf32>
    %c0_14 = arith.constant 0 : index
    %c0_15 = arith.constant 0 : index
    %31 = vector.load %arg7[%c0_14, %c0_15] : memref<16x128xf32, #tpu.memory_space<vmem>>, vector<16x128xf32>
    tpu.vector_store %arg7[%c0_14, %c0_15], %30 {strides = array<i32>} : memref<16x128xf32, #tpu.memory_space<vmem>>, vector<16x128xf32>,
    %32 = arith.mulf %1, %29 : vector<16x128xf32>
    %c0_16 = arith.constant 0 : index
    %c0_17 = arith.constant 0 : index
    %33 = vector.load %arg8[%c0_16, %c0_17] : memref<16x128xf32, #tpu.memory_space<vmem>>, vector<16x128xf32>
    tpu.vector_store %arg8[%c0_16, %c0_17], %32 {strides = array<i32>} : memref<16x128xf32, #tpu.memory_space<vmem>>, vector<16x128xf32>,
    return
  }
  func.func @transform_0(%arg0: i32) -> (i32, i32) {
    %c0_i32 = arith.constant 0 : i32
    %c0_i32_0 = arith.constant 0 : i32
    return %arg0, %c0_i32 : i32, i32
  }
  func.func @transform_1(%arg0: i32) -> (i32, i32) {
    %c0_i32 = arith.constant 0 : i32
    %c0_i32_0 = arith.constant 0 : i32
    return %arg0, %c0_i32 : i32, i32
  }
  func.func @transform_2(%arg0: i32) -> i32 {
    %c0_i32 = arith.constant 0 : i32
    %c0_i32_0 = arith.constant 0 : i32
    return %c0_i32 : i32
  }
  func.func @transform_3(%arg0: i32) -> (i32, i32) {
    %c0_i32 = arith.constant 0 : i32
    %c0_i32_0 = arith.constant 0 : i32
    %c0_i32_1 = arith.constant 0 : i32
    return %c0_i32, %c0_i32_0 : i32, i32
  }
  func.func @transform_4(%arg0: i32) -> (i32, i32) {
    %c0_i32 = arith.constant 0 : i32
    %c0_i32_0 = arith.constant 0 : i32
    %c0_i32_1 = arith.constant 0 : i32
    return %c0_i32, %c0_i32_0 : i32, i32
  }
  func.func @transform_5(%arg0: i32) -> (i32, i32) {
    %c0_i32 = arith.constant 0 : i32
    %c0_i32_0 = arith.constant 0 : i32
    %c0_i32_1 = arith.constant 0 : i32
    return %c0_i32, %c0_i32_0 : i32, i32
  }
  func.func @transform_6(%arg0: i32) -> (i32, i32) {
    %c0_i32 = arith.constant 0 : i32
    %c0_i32_0 = arith.constant 0 : i32
    return %arg0, %c0_i32 : i32, i32
  }
  func.func @transform_7(%arg0: i32) -> (i32, i32) {
    %c0_i32 = arith.constant 0 : i32
    %c0_i32_0 = arith.constant 0 : i32
    return %arg0, %c0_i32 : i32, i32
  }
}

</mosaic_0001>

<llo_original>
// kernel: tpu_custom_call.1
$region0: #{tpu_custom_call.1}
  #allocation0 [shape = 'u32[]', space=smem, size = 0x4, offset = 0x4, fixed_abs, tag = 'smem constant byte address 0x4 - core index']
  #allocation1 [shape = 'u32[144,128]{1,0:T(1,128)}', space=vmem, size = 0x12000, scoped, tag = 'internal scratch']
  %s0 = inlined_call_operand.vmem [shape: f32[18,128], index: 0, kind: input, shape index: {}]
  %s1 = inlined_call_operand.vmem [shape: f32[18,128], index: 1, kind: input, shape index: {}]
  %s2 = inlined_call_operand.vmem [shape: f32[3], index: 2, kind: input, shape index: {}]
  %s3 = inlined_call_operand.vmem [shape: f32[128,32], index: 3, kind: input, shape index: {}]
  %s4 = inlined_call_operand.vmem [shape: f32[1,32], index: 4, kind: input, shape index: {}]
  %s5 = inlined_call_operand.vmem [shape: f32[32,128], index: 5, kind: input, shape index: {}]
  %s6 = inlined_call_operand.hbm [shape: f32[18,128], index: 6, kind: output, shape index: {0}]
  %s7 = inlined_call_operand.hbm [shape: f32[18,128], index: 7, kind: output, shape index: {1}]
  %8 = xla_tuple %s6, %s7
  %s9 = sld [smem:[#allocation0]]
  $region69: #{tpu_custom_call.1} parent=0
    _
  %s11 = ssub.s32 1, %s9
  %s12 = scalar_select 0, %s11, %s9
  $region1: #{tpu_custom_call.1} parent=0
    #allocation2 [shape = 'u8[512]{0}', space=smem, size = 0x200, scoped, tag = 'input window, operand 2, single buffered']
    #allocation3 [shape = 's32[2]{0}', space=sflag, size = 0x8, scoped, tag = 'scoped memory for tpu_custom_call.1']
    #allocation4 [shape = 's32[2]{0}', space=sflag, size = 0x8, scoped, tag = 'scoped memory for tpu_custom_call.1']
    #allocation5 [shape = 'u8[16384]{0}', space=vmem, size = 0x4000, scoped, tag = 'output window, operand 0']
    #allocation6 [shape = 'u8[16384]{0}', space=vmem, size = 0x4000, scoped, tag = 'output window, operand 1']
    #allocation7 [shape = 's32[2]{0}', space=sflag, size = 0x8, scoped, tag = 'scoped memory for tpu_custom_call.1']
    %13 = vsyncpa [#allocation4], 0
    %14 = vsyncpa [#allocation3], 0
    %s15 = scalar_lea.sflag [#allocation3], 1
    %16 = vsyncpa %s15, 0
    %17 = vsyncpa [#allocation7], 0
    %s18 = scalar_lea.sflag [#allocation7], 1
    %19 = vsyncpa %s18, 0
    loop: start=0, step=1, limit=4
    $region2: #{tpu_custom_call.1} parent=1 // loop_pre_header
      _
    $region3: #{tpu_custom_call.1} parent=1 // loop_header
      %s21 = sphi 0, %s25
      %p22 = scmp.ge.s32.totalorder %s21, 4
      %s31 = sphi 0, %s33
      %s34 = sphi 0, %s31
      %s35 = sphi 0, %s34
      %s51 = sphi 0, %s35
      %s57 = sphi 0, %s59
      %s60 = sphi 0, %s57
      %s61 = sphi 0, %s60
      %s77 = sphi 0, %s61
      %s81 = sphi 0, %s81
      %s83 = sphi 0, %s81
      %s84 = sphi 0, %s83
      %s98 = sphi 0, %s84
      %s102 = sphi 0, %s102
      %s104 = sphi 0, %s102
      %s105 = sphi 0, %s104
      %s119 = sphi 0, %s105
      %s123 = sphi 0, %s123
      %s125 = sphi 0, %s123
      %s126 = sphi 0, %s125
      %s140 = sphi 0, %s126
      %s144 = sphi 0, %s144
      %s146 = sphi 0, %s144
      %s147 = sphi 0, %s146
      %s161 = sphi 0, %s147
      %s167 = sphi 0, %s169
      %s170 = sphi 0, %s167
      %s171 = sphi 0, %s170
      %s187 = sphi 0, %s171
      %s193 = sphi 0, %s195
      %s196 = sphi 0, %s193
      %s197 = sphi 0, %s196
      %s213 = sphi 0, %s197
    $region4: #{tpu_custom_call.1} parent=1 // loop_header_branch
      %24 = sbr.rel (%p22) target = $region8
    $region5: #{tpu_custom_call.1} parent=1 // loop_body
      %s26 = ssub.s32 %s21, 1
      %s27 = ssub.s32 %s21, 2
      %s28 = sadd.s32 %s21, 1
      %s29 = ssub.s32 %s21, %s28
      %p30 = scmp.eq.s32.totalorder %s29, 0
      %s32 = sadd.s32 %s31, 1
      %s33 = scalar_select %p30, %s31, %s32
      %p36 = pneg %p30
      %p37 = scmp.eq.s32.totalorder %s21, 1
      %p38 = por %p36, %p37
      %p39 = scmp.ne.s32.totalorder %s31, %s34
      %p40 = scmp.eq.s32.totalorder %s21, 0
      %p41 = por %p39, %p40
      %p42 = scmp.ne.s32.totalorder %s31, %s34
      %p43 = scmp.eq.s32.totalorder %s26, 1
      %p44 = por %p42, %p43
      %p45 = scmp.ne.s32.totalorder %s34, %s35
      %p46 = scmp.eq.s32.totalorder %s26, 0
      %p47 = por %p45, %p46
      %p48 = scmp.ne.s32.totalorder %s34, %s35
      %p49 = scmp.eq.s32.totalorder %s27, 1
      %p50 = por %p48, %p49
      %p52 = scmp.ne.s32.totalorder %s35, %s51
      %p53 = scmp.eq.s32.totalorder %s27, 0
      %p54 = por %p52, %p53
      %s55 = ssub.s32 %s21, %s28
      %p56 = scmp.eq.s32.totalorder %s55, 0
      %s58 = sadd.s32 %s57, 1
      %s59 = scalar_select %p56, %s57, %s58
      %p62 = pneg %p56
      %p63 = scmp.eq.s32.totalorder %s21, 1
      %p64 = por %p62, %p63
      %p65 = scmp.ne.s32.totalorder %s57, %s60
      %p66 = scmp.eq.s32.totalorder %s21, 0
      %p67 = por %p65, %p66
      %p68 = scmp.ne.s32.totalorder %s57, %s60
      %p69 = scmp.eq.s32.totalorder %s26, 1
      %p70 = por %p68, %p69
      %p71 = scmp.ne.s32.totalorder %s60, %s61
      %p72 = scmp.eq.s32.totalorder %s26, 0
      %p73 = por %p71, %p72
      %p74 = scmp.ne.s32.totalorder %s60, %s61
      %p75 = scmp.eq.s32.totalorder %s27, 1
      %p76 = por %p74, %p75
      %p78 = scmp.ne.s32.totalorder %s61, %s77
      %p79 = scmp.eq.s32.totalorder %s27, 0
      %p80 = por %p78, %p79
      %s82 = sadd.s32 %s81, 1
      %p85 = scmp.eq.s32.totalorder %s21, 1
      %p86 = scmp.ne.s32.totalorder %s81, %s83
      %p87 = scmp.eq.s32.totalorder %s21, 0
      %p88 = por %p86, %p87
      %p89 = scmp.ne.s32.totalorder %s81, %s83
      %p90 = scmp.eq.s32.totalorder %s26, 1
      %p91 = por %p89, %p90
      %p92 = scmp.ne.s32.totalorder %s83, %s84
      %p93 = scmp.eq.s32.totalorder %s26, 0
      %p94 = por %p92, %p93
      %p95 = scmp.ne.s32.totalorder %s83, %s84
      %p96 = scmp.eq.s32.totalorder %s27, 1
      %p97 = por %p95, %p96
      %p99 = scmp.ne.s32.totalorder %s84, %s98
      %p100 = scmp.eq.s32.totalorder %s27, 0
      %p101 = por %p99, %p100
      %s103 = sadd.s32 %s102, 1
      %p106 = scmp.eq.s32.totalorder %s21, 1
      %p107 = scmp.ne.s32.totalorder %s102, %s104
      %p108 = scmp.eq.s32.totalorder %s21, 0
      %p109 = por %p107, %p108
      %p110 = scmp.ne.s32.totalorder %s102, %s104
      %p111 = scmp.eq.s32.totalorder %s26, 1
      %p112 = por %p110, %p111
      %p113 = scmp.ne.s32.totalorder %s104, %s105
      %p114 = scmp.eq.s32.totalorder %s26, 0
      %p115 = por %p113, %p114
      %p116 = scmp.ne.s32.totalorder %s104, %s105
      %p117 = scmp.eq.s32.totalorder %s27, 1
      %p118 = por %p116, %p117
      %p120 = scmp.ne.s32.totalorder %s105, %s119
      %p121 = scmp.eq.s32.totalorder %s27, 0
      %p122 = por %p120, %p121
      %s124 = sadd.s32 %s123, 1
      %p127 = scmp.eq.s32.totalorder %s21, 1
      %p128 = scmp.ne.s32.totalorder %s123, %s125
      %p129 = scmp.eq.s32.totalorder %s21, 0
      %p130 = por %p128, %p129
      %p131 = scmp.ne.s32.totalorder %s123, %s125
      %p132 = scmp.eq.s32.totalorder %s26, 1
      %p133 = por %p131, %p132
      %p134 = scmp.ne.s32.totalorder %s125, %s126
      %p135 = scmp.eq.s32.totalorder %s26, 0
      %p136 = por %p134, %p135
      %p137 = scmp.ne.s32.totalorder %s125, %s126
      %p138 = scmp.eq.s32.totalorder %s27, 1
      %p139 = por %p137, %p138
      %p141 = scmp.ne.s32.totalorder %s126, %s140
      %p142 = scmp.eq.s32.totalorder %s27, 0
      %p143 = por %p141, %p142
      %s145 = sadd.s32 %s144, 1
      %p148 = scmp.eq.s32.totalorder %s21, 1
      %p149 = scmp.ne.s32.totalorder %s144, %s146
      %p150 = scmp.eq.s32.totalorder %s21, 0
      %p151 = por %p149, %p150
      %p152 = scmp.ne.s32.totalorder %s144, %s146
      %p153 = scmp.eq.s32.totalorder %s26, 1
      %p154 = por %p152, %p153
      %p155 = scmp.ne.s32.totalorder %s146, %s147
      %p156 = scmp.eq.s32.totalorder %s26, 0
      %p157 = por %p155, %p156
      %p158 = scmp.ne.s32.totalorder %s146, %s147
      %p159 = scmp.eq.s32.totalorder %s27, 1
      %p160 = por %p158, %p159
      %p162 = scmp.ne.s32.totalorder %s147, %s161
      %p163 = scmp.eq.s32.totalorder %s27, 0
      %p164 = por %p162, %p163
      %s165 = ssub.s32 %s21, %s28
      %p166 = scmp.eq.s32.totalorder %s165, 0
      %s168 = sadd.s32 %s167, 1
      %s169 = scalar_select %p166, %s167, %s168
      %p172 = pneg %p166
      %p173 = scmp.eq.s32.totalorder %s21, 1
      %p174 = por %p172, %p173
      %p175 = scmp.ne.s32.totalorder %s167, %s170
      %p176 = scmp.eq.s32.totalorder %s21, 0
      %p177 = por %p175, %p176
      %p178 = scmp.ne.s32.totalorder %s167, %s170
      %p179 = scmp.eq.s32.totalorder %s26, 1
      %p180 = por %p178, %p179
      %p181 = scmp.ne.s32.totalorder %s170, %s171
      %p182 = scmp.eq.s32.totalorder %s26, 0
      %p183 = por %p181, %p182
      %p184 = scmp.ne.s32.totalorder %s170, %s171
      %p185 = scmp.eq.s32.totalorder %s27, 1
      %p186 = por %p184, %p185
      %p188 = scmp.ne.s32.totalorder %s171, %s187
      %p189 = scmp.eq.s32.totalorder %s27, 0
      %p190 = por %p188, %p189
      %s191 = ssub.s32 %s21, %s28
      %p192 = scmp.eq.s32.totalorder %s191, 0
      %s194 = sadd.s32 %s193, 1
      %s195 = scalar_select %p192, %s193, %s194
      %p198 = pneg %p192
      %p199 = scmp.eq.s32.totalorder %s21, 1
      %p200 = por %p198, %p199
      %p201 = scmp.ne.s32.totalorder %s193, %s196
      %p202 = scmp.eq.s32.totalorder %s21, 0
      %p203 = por %p201, %p202
      %p204 = scmp.ne.s32.totalorder %s193, %s196
      %p205 = scmp.eq.s32.totalorder %s26, 1
      %p206 = por %p204, %p205
      %p207 = scmp.ne.s32.totalorder %s196, %s197
      %p208 = scmp.eq.s32.totalorder %s26, 0
      %p209 = por %p207, %p208
      %p210 = scmp.ne.s32.totalorder %s196, %s197
      %p211 = scmp.eq.s32.totalorder %s27, 1
      %p212 = por %p210, %p211
      %p214 = scmp.ne.s32.totalorder %s197, %s213
      %p215 = scmp.eq.s32.totalorder %s27, 0
      %p216 = por %p214, %p215
      %p217 = scmp.le.s32.totalorder 1, %s21
      %p218 = scmp.lt.s32.totalorder %s21, 3
      %p219 = pnand %p217, %p218
      %p220 = pneg %p219
      // Predicated region
      $region9: #{tpu_custom_call.1} parent=5 // pred_check
        _
      $region10: #{tpu_custom_call.1} parent=5 // pred_check_branch
        %222 = sbr.rel (%p219) target = $region12
      $region11: #{tpu_custom_call.1} parent=5 // pred_region
        %s223 = ssub.s32 %s21, 1
        // Predicated region
        $region13: #{tpu_custom_call.1} parent=11 // pred_check
          %p224 = pneg %p94
        $region14: #{tpu_custom_call.1} parent=11 // pred_check_branch
          %226 = sbr.rel (%p224) target = $region16
        $region15: #{tpu_custom_call.1} parent=11 // pred_region
          %s228 = ssub.s32 16, 16
          %229 = vsyncadd [#allocation4], %s228
          %s231 = sshll.u32 %s2, 4
          %s232 = int_to_ptr.vmem [resolvable:$true] %s231
          %234 = dma.vmem_to_smem %s232, 16, [#allocation2], [#allocation4]
        $region16: #{tpu_custom_call.1} parent=11 // pred_fallthru
          _
        // Predicated region
        $region17: #{tpu_custom_call.1} parent=11 // pred_check
          %p235 = pneg %p115
        $region18: #{tpu_custom_call.1} parent=11 // pred_check_branch
          %237 = sbr.rel (%p235) target = $region20
        $region19: #{tpu_custom_call.1} parent=11 // pred_region
          _
        $region20: #{tpu_custom_call.1} parent=11 // pred_fallthru
          _
        // Predicated region
        $region21: #{tpu_custom_call.1} parent=11 // pred_check
          %p238 = pneg %p136
        $region22: #{tpu_custom_call.1} parent=11 // pred_check_branch
          %240 = sbr.rel (%p238) target = $region24
        $region23: #{tpu_custom_call.1} parent=11 // pred_region
          _
        $region24: #{tpu_custom_call.1} parent=11 // pred_fallthru
          _
        // Predicated region
        $region25: #{tpu_custom_call.1} parent=11 // pred_check
          %p241 = pneg %p157
        $region26: #{tpu_custom_call.1} parent=11 // pred_check_branch
          %243 = sbr.rel (%p241) target = $region28
        $region27: #{tpu_custom_call.1} parent=11 // pred_region
          _
        $region28: #{tpu_custom_call.1} parent=11 // pred_fallthru
          _
      $region12: #{tpu_custom_call.1} parent=5 // pred_fallthru
        _
      %p244 = scmp.lt.s32.totalorder %s21, 2
      // Predicated region
      $region29: #{tpu_custom_call.1} parent=5 // pred_check
        %p245 = pneg %p244
      $region30: #{tpu_custom_call.1} parent=5 // pred_check_branch
        %247 = sbr.rel (%p245) target = $region32
      $region31: #{tpu_custom_call.1} parent=5 // pred_region
        // Predicated region
        $region33: #{tpu_custom_call.1} parent=31 // pred_check
          %p248 = pneg %p41
        $region34: #{tpu_custom_call.1} parent=31 // pred_check_branch
          %250 = sbr.rel (%p248) target = $region36
        $region35: #{tpu_custom_call.1} parent=31 // pred_region
          %s251 = smul.u32 2, %s21
          %s252 = ssub.s32 3, %s251
          %p253 = scmp.lt.s32.totalorder %s252, 2
          %s254 = scalar_select %p253, %s252, 2
          %s255 = smul.u32 128, %s254
          %p256 = scmp.lt.s32.totalorder %s251, 2
          %s257 = scalar_select %p256, %s251, 2
          %s258 = smul.addr %s257, 8
          %s259 = scalar_lea.vmem %s0, %s258
          %s260 = smul.u32 2, %s21
          %s261 = ssub.s32 3, %s260
          %p262 = scmp.lt.s32.totalorder %s261, 2
          %s263 = scalar_select %p262, %s261, 2
          %s264 = smul.u32 128, %s263
        $region36: #{tpu_custom_call.1} parent=31 // pred_fallthru
          _
        // Predicated region
        $region37: #{tpu_custom_call.1} parent=31 // pred_check
          %p265 = pneg %p67
        $region38: #{tpu_custom_call.1} parent=31 // pred_check_branch
          %267 = sbr.rel (%p265) target = $region40
        $region39: #{tpu_custom_call.1} parent=31 // pred_region
          %s268 = smul.u32 2, %s21
          %s269 = ssub.s32 3, %s268
          %p270 = scmp.lt.s32.totalorder %s269, 2
          %s271 = scalar_select %p270, %s269, 2
          %s272 = smul.u32 128, %s271
          %p273 = scmp.lt.s32.totalorder %s268, 2
          %s274 = scalar_select %p273, %s268, 2
          %s275 = smul.addr %s274, 8
          %s276 = scalar_lea.vmem %s1, %s275
          %s277 = smul.u32 2, %s21
          %s278 = ssub.s32 3, %s277
          %p279 = scmp.lt.s32.totalorder %s278, 2
          %s280 = scalar_select %p279, %s278, 2
          %s281 = smul.u32 128, %s280
        $region40: #{tpu_custom_call.1} parent=31 // pred_fallthru
          _
      $region32: #{tpu_custom_call.1} parent=5 // pred_fallthru
        _
      %p282 = scmp.le.s32.totalorder 1, %s21
      %p283 = scmp.lt.s32.totalorder %s21, 3
      %p284 = pnand %p282, %p283
      %p285 = pneg %p284
      // Predicated region
      $region41: #{tpu_custom_call.1} parent=5 // pred_check
        _
      $region42: #{tpu_custom_call.1} parent=5 // pred_check_branch
        %287 = sbr.rel (%p284) target = $region44
      $region43: #{tpu_custom_call.1} parent=5 // pred_region
        %s288 = ssub.s32 %s21, 1
        // Predicated region
        $region45: #{tpu_custom_call.1} parent=43 // pred_check
          %p289 = pneg %p94
        $region46: #{tpu_custom_call.1} parent=43 // pred_check_branch
          %291 = sbr.rel (%p289) target = $region48
        $region47: #{tpu_custom_call.1} parent=43 // pred_region
          %292 = dma.done [#allocation4], 16
        $region48: #{tpu_custom_call.1} parent=43 // pred_fallthru
          _
        %293 = sfence
        %s294 = smul.u32 2, %s26
        %s295 = ssub.s32 3, %s294
        %p296 = scmp.lt.s32.totalorder %s295, 2
        %s297 = scalar_select %p296, %s295, 2
        %s298 = smul.u32 128, %s297
        %p299 = scmp.lt.s32.totalorder %s294, 2
        %s300 = scalar_select %p299, %s294, 2
        %s301 = smul.addr %s300, 8
        %s302 = scalar_lea.vmem %s0, %s301
        %p303 = pneg %p47
        %p304 = pneg %p44
        %s305 = smul.u32 2, %s26
        %s306 = ssub.s32 3, %s305
        %p307 = scmp.lt.s32.totalorder %s306, 2
        %s308 = scalar_select %p307, %s306, 2
        %s309 = smul.u32 128, %s308
        %p310 = scmp.lt.s32.totalorder %s305, 2
        %s311 = scalar_select %p310, %s305, 2
        %s312 = smul.addr %s311, 8
        %s313 = scalar_lea.vmem %s1, %s312
        %p314 = pneg %p73
        %p315 = pneg %p70
        %p316 = pneg %p94
        %p317 = pneg %p91
        %p318 = pneg %p115
        %p319 = pneg %p112
        %p320 = pneg %p136
        %p321 = pneg %p133
        %p322 = pneg %p157
        %p323 = pneg %p154
        %p324 = pneg %p183
        %p325 = pneg %p180
        %s326 = sand.u32 %s170, 1
        %s327 = scalar_lea.sflag [#allocation3], %s326
        %s328 = sand.u32 %s170, 1
        %s329 = smul.addr %s328, 16
        %s330 = scalar_lea.vmem [#allocation5], %s329
        %p331 = pneg %p209
        %p332 = pneg %p206
        %s333 = sand.u32 %s196, 1
        %s334 = scalar_lea.sflag [#allocation7], %s333
        %s335 = sand.u32 %s196, 1
        %s336 = smul.addr %s335, 16
        %s337 = scalar_lea.vmem [#allocation6], %s336
        %s338 = smul.u32 2, %s26
        %s339 = ssub.s32 3, %s338
        %p340 = scmp.lt.s32.totalorder %s339, 2
        %s341 = scalar_select %p340, %s339, 2
        %s342 = smul.u32 128, %s341
        %p343 = scmp.lt.s32.totalorder %s338, 2
        %s344 = scalar_select %p343, %s338, 2
        %s345 = smul.addr %s344, 8
        %s346 = scalar_lea.vmem %s0, %s345
        %s347 = smul.u32 2, %s26
        %s348 = ssub.s32 3, %s347
        %p349 = scmp.lt.s32.totalorder %s348, 2
        %s350 = scalar_select %p349, %s348, 2
        %s351 = smul.u32 128, %s350
        %s352 = smul.u32 2, %s26
        %s353 = ssub.s32 3, %s352
        %p354 = scmp.lt.s32.totalorder %s353, 2
        %s355 = scalar_select %p354, %s353, 2
        %s356 = smul.u32 128, %s355
        %p357 = scmp.lt.s32.totalorder %s352, 2
        %s358 = scalar_select %p357, %s352, 2
        %s359 = smul.addr %s358, 8
        %s360 = scalar_lea.vmem %s1, %s359
        %s361 = smul.u32 2, %s26
        %s362 = ssub.s32 3, %s361
        %p363 = scmp.lt.s32.totalorder %s362, 2
        %s364 = scalar_select %p363, %s362, 2
        %s365 = smul.u32 128, %s364
        %s366 = smul.u32 2, %s26
        %s367 = ssub.s32 3, %s366
        %p368 = scmp.lt.s32.totalorder %s367, 2
        %s369 = scalar_select %p368, %s367, 2
        %s370 = smul.u32 128, %s369
        %s371 = smul.u32 2, %s26
        %s372 = ssub.s32 3, %s371
        %p373 = scmp.lt.s32.totalorder %s372, 2
        %s374 = scalar_select %p373, %s372, 2
        %s375 = smul.u32 128, %s374
        %v376 = vld [vmem:[%s346] sm:$0xff]
        %v377 = vld [vmem:[%s346 + $0x8] sm:$0xff]
        %v378 = vld [vmem:[%s360] sm:$0xff]
        %v379 = vld [vmem:[%s360 + $0x8] sm:$0xff]
        %v380 = vsub.f32 %v376, %v378
        %v381 = vsub.f32 %v377, %v379
        %v382 = vand.u32 2147483647, %v380
        %v383 = vand.u32 2147483647, %v381
        %s384 = sld [smem:[#allocation2]]
        %v385 = vstv %s384
        %v386 = vmul.f32 %v385, %v382
        %v387 = vmul.f32 %v385, %v383
        %s388 = sld [smem:[#allocation2 + $0x1]]
        %v389 = vstv %s388
        %v390 = vmul.f32 %v389, %v376
        %v391 = vmul.f32 %v389, %v377
        %v392 = vadd.f32 %v386, %v390
        %v393 = vadd.f32 %v387, %v391
        %s394 = sld [smem:[#allocation2 + $0x2]]
        %v395 = vstv %s394
        %v396 = vmul.f32 %v395, %v378
        %v397 = vmul.f32 %v395, %v379
        %v398 = vadd.f32 %v392, %v396
        %v399 = vadd.f32 %v393, %v397
        %v400 = vld [vmem:[%s3] sm:$0xff]
        %v401 = vld [vmem:[%s3 + $0x8] sm:$0xff]
        %v402 = vld [vmem:[%s3 + $0x10] sm:$0xff]
        %v403 = vld [vmem:[%s3 + $0x18] sm:$0xff]
        %v404 = vld [vmem:[%s3 + $0x20] sm:$0xff]
        %v405 = vld [vmem:[%s3 + $0x28] sm:$0xff]
        %v406 = vld [vmem:[%s3 + $0x30] sm:$0xff]
        %v407 = vld [vmem:[%s3 + $0x38] sm:$0xff]
        %v408 = vld [vmem:[%s3 + $0x40] sm:$0xff]
        %v409 = vld [vmem:[%s3 + $0x48] sm:$0xff]
        %v410 = vld [vmem:[%s3 + $0x50] sm:$0xff]
        %v411 = vld [vmem:[%s3 + $0x58] sm:$0xff]
        %v412 = vld [vmem:[%s3 + $0x60] sm:$0xff]
        %v413 = vld [vmem:[%s3 + $0x68] sm:$0xff]
        %v414 = vld [vmem:[%s3 + $0x70] sm:$0xff]
        %v415 = vld [vmem:[%s3 + $0x78] sm:$0xff]
        %v416 = vld [vmem:[%s4] sm:$0x1]
        %v418 = vlaneseq
        %v419 = vshrl.u32 %v418, 7
        %v420 = vsub.s32 0, %v419
        %v421 = vrot.slane %v416, %v420
        %423 = vmatprep.subr.mxu0 0.0
        %424 = vmatpush1.msra.mxu0 %v400
        %425 = vmatprep.subr.mxu0 0.0
        %426 = vmatpush1.msra.mxu0 %v401
        %427 = vmatprep.subr.mxu0 0.0
        %428 = vmatpush1.msra.mxu0 %v402
        %429 = vmatprep.subr.mxu0 0.0
        %430 = vmatpush1.msra.mxu0 %v403
        %431 = vmatprep.subr.mxu0 0.0
        %432 = vmatpush1.msra.mxu0 %v404
        %433 = vmatprep.subr.mxu0 0.0
        %434 = vmatpush1.msra.mxu0 %v405
        %435 = vmatprep.subr.mxu0 0.0
        %436 = vmatpush1.msra.mxu0 %v406
        %437 = vmatprep.subr.mxu0 0.0
        %438 = vmatpush1.msra.mxu0 %v407
        %439 = vmatprep.subr.mxu0 0.0
        %440 = vmatpush1.msra.mxu0 %v408
        %441 = vmatprep.subr.mxu0 0.0
        %442 = vmatpush1.msra.mxu0 %v409
        %443 = vmatprep.subr.mxu0 0.0
        %444 = vmatpush1.msra.mxu0 %v410
        %445 = vmatprep.subr.mxu0 0.0
        %446 = vmatpush1.msra.mxu0 %v411
        %447 = vmatprep.subr.mxu0 0.0
        %448 = vmatpush1.msra.mxu0 %v412
        %449 = vmatprep.subr.mxu0 0.0
        %450 = vmatpush1.msra.mxu0 %v413
        %451 = vmatprep.subr.mxu0 0.0
        %452 = vmatpush1.msra.mxu0 %v414
        %453 = vmatprep.subr.mxu0 0.0
        %454 = vmatpush1.msra.mxu0 %v415
        %455 = vmatprep.subr.mxu0 0.0
        %456 = vmatpush1.msra.mxu0 0.0
        %457 = vmatprep.subr.mxu0 0.0
        %458 = vmatpush1.msra.mxu0 0.0
        %459 = vmatprep.subr.mxu0 0.0
        %460 = vmatpush1.msra.mxu0 0.0
        %461 = vmatprep.subr.mxu0 0.0
        %462 = vmatpush1.msra.mxu0 0.0
        %463 = vmatprep.subr.mxu0 0.0
        %464 = vmatpush1.msra.mxu0 0.0
        %465 = vmatprep.subr.mxu0 0.0
        %466 = vmatpush1.msra.mxu0 0.0
        %467 = vmatprep.subr.mxu0 0.0
        %468 = vmatpush1.msra.mxu0 0.0
        %469 = vmatprep.subr.mxu0 0.0
        %470 = vmatpush1.msra.mxu0 0.0
        %471 = vmatprep.subr.mxu0 0.0
        %472 = vmatpush1.msra.mxu0 0.0
        %473 = vmatprep.subr.mxu0 0.0
        %474 = vmatpush1.msra.mxu0 0.0
        %475 = vmatprep.subr.mxu0 0.0
        %476 = vmatpush1.msra.mxu0 0.0
        %477 = vmatprep.subr.mxu0 0.0
        %478 = vmatpush1.msra.mxu0 0.0
        %479 = vmatprep.subr.mxu0 0.0
        %480 = vmatpush1.msra.mxu0 0.0
        %481 = vmatprep.subr.mxu0 0.0
        %482 = vmatpush1.msra.mxu0 0.0
        %483 = vmatprep.subr.mxu0 0.0
        %484 = vmatpush1.msra.mxu0 0.0
        %485 = vmatprep.subr.mxu0 0.0
        %486 = vmatpush1.msra.mxu0 0.0
        %487 = vmatprep.mubr.f32.mxu0 0.0
        %488 = vmatmul.mubr.f32.gmra.mrb[0].mxu0 %v398
        %v489 = vpop.f32.mrb[0].mxu0
        %v490 = vadd.f32 %v421, %v489
        %v491 = vpop.f32.mrb[0].mxu0
        %492 = vmatprep.mubr.f32.mxu0 0.0
        %493 = vmatmul.mubr.f32.gmra.mrb[0].mxu0 %v399
        %v494 = vpop.f32.mrb[0].mxu0
        %v495 = vadd.f32 %v421, %v494
        %v496 = vpop.f32.mrb[0].mxu0
        %497 = vdwg.mxu0
        %v498 = vmax.f32 %v490, 0.0
        %v499 = vmax.f32 %v495, 0.0
        %v500 = vld [vmem:[%s5] sm:$0xff]
        %v501 = vld [vmem:[%s5 + $0x8] sm:$0xff]
        %v502 = vld [vmem:[%s5 + $0x10] sm:$0xff]
        %v503 = vld [vmem:[%s5 + $0x18] sm:$0xff]
        %vm504 = vcmask 261120
        %v506 = vsel %vm504, %v498, 0
        %v509 = vsel %vm504, %v499, 0
        %511 = vmatprep.subr.mxu0 0.0
        %512 = vmatpush1.msra.mxu0 %v500
        %513 = vmatprep.subr.mxu0 0.0
        %514 = vmatpush1.msra.mxu0 %v501
        %515 = vmatprep.subr.mxu0 0.0
        %516 = vmatpush1.msra.mxu0 %v502
        %517 = vmatprep.subr.mxu0 0.0
        %518 = vmatpush1.msra.mxu0 %v503
        %519 = vmatprep.subr.mxu0 0.0
        %520 = vmatpush1.msra.mxu0 0.0
        %521 = vmatprep.subr.mxu0 0.0
        %522 = vmatpush1.msra.mxu0 0.0
        %523 = vmatprep.subr.mxu0 0.0
        %524 = vmatpush1.msra.mxu0 0.0
        %525 = vmatprep.subr.mxu0 0.0
        %526 = vmatpush1.msra.mxu0 0.0
        %527 = vmatprep.subr.mxu0 0.0
        %528 = vmatpush1.msra.mxu0 0.0
        %529 = vmatprep.subr.mxu0 0.0
        %530 = vmatpush1.msra.mxu0 0.0
        %531 = vmatprep.subr.mxu0 0.0
        %532 = vmatpush1.msra.mxu0 0.0
        %533 = vmatprep.subr.mxu0 0.0
        %534 = vmatpush1.msra.mxu0 0.0
        %535 = vmatprep.subr.mxu0 0.0
        %536 = vmatpush1.msra.mxu0 0.0
        %537 = vmatprep.subr.mxu0 0.0
        %538 = vmatpush1.msra.mxu0 0.0
        %539 = vmatprep.subr.mxu0 0.0
        %540 = vmatpush1.msra.mxu0 0.0
        %541 = vmatprep.subr.mxu0 0.0
        %542 = vmatpush1.msra.mxu0 0.0
        %543 = vmatprep.subr.mxu0 0.0
        %544 = vmatpush1.msra.mxu0 0.0
        %545 = vmatprep.subr.mxu0 0.0
        %546 = vmatpush1.msra.mxu0 0.0
        %547 = vmatprep.subr.mxu0 0.0
        %548 = vmatpush1.msra.mxu0 0.0
        %549 = vmatprep.subr.mxu0 0.0
        %550 = vmatpush1.msra.mxu0 0.0
        %551 = vmatprep.subr.mxu0 0.0
        %552 = vmatpush1.msra.mxu0 0.0
        %553 = vmatprep.subr.mxu0 0.0
        %554 = vmatpush1.msra.mxu0 0.0
        %555 = vmatprep.subr.mxu0 0.0
        %556 = vmatpush1.msra.mxu0 0.0
        %557 = vmatprep.subr.mxu0 0.0
        %558 = vmatpush1.msra.mxu0 0.0
        %559 = vmatprep.subr.mxu0 0.0
        %560 = vmatpush1.msra.mxu0 0.0
        %561 = vmatprep.subr.mxu0 0.0
        %562 = vmatpush1.msra.mxu0 0.0
        %563 = vmatprep.subr.mxu0 0.0
        %564 = vmatpush1.msra.mxu0 0.0
        %565 = vmatprep.subr.mxu0 0.0
        %566 = vmatpush1.msra.mxu0 0.0
        %567 = vmatprep.subr.mxu0 0.0
        %568 = vmatpush1.msra.mxu0 0.0
        %569 = vmatprep.subr.mxu0 0.0
        %570 = vmatpush1.msra.mxu0 0.0
        %571 = vmatprep.subr.mxu0 0.0
        %572 = vmatpush1.msra.mxu0 0.0
        %573 = vmatprep.subr.mxu0 0.0
        %574 = vmatpush1.msra.mxu0 0.0
        %575 = vmatprep.mubr.f32.mxu0 0.0
        %576 = vmatmul.mubr.f32.gmra.mrb[0].mxu0 %v506
        %v577 = vpop.f32.mrb[0].mxu0
        %v578 = vadd.f32 0.0, %v577
        %v579 = vpop.f32.mrb[0].mxu0
        %580 = vmatprep.mubr.f32.mxu0 0.0
        %581 = vmatmul.mubr.f32.gmra.mrb[0].mxu0 %v509
        %v582 = vpop.f32.mrb[0].mxu0
        %v583 = vadd.f32 0.0, %v582
        %v584 = vpop.f32.mrb[0].mxu0
        %585 = vdwg.mxu0
        %v586 = vsub.f32 0.0, %v578
        %v587 = vsub.f32 0.0, %v583
        %v588 = vmul.f32 %v586, 1.442695
        %v589 = vpow.pop %v588
        %v590 = vmul.f32 %v587, 1.442695
        %v591 = vpow.pop %v590
        %v592 = vadd.f32 %v589, 1.0
        %v593 = vadd.f32 %v591, 1.0
        %v594 = vrcp.pop %v592
        %v595 = vrcp.pop %v593
        %v596 = vmul.f32 %v376, %v594
        %v597 = vmul.f32 %v377, %v595
        %598 = vst [vmem:[%s330] sm:$0xff] %v596
        %599 = vst [vmem:[%s330 + $0x8] sm:$0xff] %v597
        %v600 = vmul.f32 %v378, %v594
        %v601 = vmul.f32 %v379, %v595
        %602 = vst [vmem:[%s337] sm:$0xff] %v600
        %603 = vst [vmem:[%s337 + $0x8] sm:$0xff] %v601
        %s604 = sand.u32 %s170, 1
        %s605 = scalar_lea.sflag [#allocation3], %s604
        %s606 = sand.u32 %s170, 1
        %s607 = smul.addr %s606, 16
        %s608 = scalar_lea.vmem [#allocation5], %s607
        %s609 = sand.u32 %s196, 1
        %s610 = scalar_lea.sflag [#allocation7], %s609
        %s611 = sand.u32 %s196, 1
        %s612 = smul.addr %s611, 16
        %s613 = scalar_lea.vmem [#allocation6], %s612
        // Predicated region
        $region49: #{tpu_custom_call.1} parent=43 // pred_check
          %p614 = pneg %p180
        $region50: #{tpu_custom_call.1} parent=43 // pred_check_branch
          %616 = sbr.rel (%p614) target = $region52
        $region51: #{tpu_custom_call.1} parent=43 // pred_region
          %s617 = smul.u32 2, %s26
          %s618 = ssub.s32 3, %s617
          %p619 = scmp.lt.s32.totalorder %s618, 2
          %s620 = scalar_select %p619, %s618, 2
          %s621 = smul.u32 128, %s620
          %s623 = ssub.s32 256, %s621
          %624 = vsyncadd %s605, %s623
          %p625 = scmp.ne.s32.totalorder 0, %s621
          %s626 = smul.addr %s617, 128
          %s627 = scalar_lea.hbm %s6, %s626
          %s628 = smul.u32 8, %s620
          %s629 = sshll.u32 %s608, 4
          %s630 = int_to_ptr.vmem [resolvable:$true] %s629
          %s631 = sshll.u32 %s628, 4
          %635 = dma.vmem_to_hbm [thread:$0]  (%p625), %s630, %s631, %s627, %s605, 128, 128, 8
        $region52: #{tpu_custom_call.1} parent=43 // pred_fallthru
          _
        // Predicated region
        $region53: #{tpu_custom_call.1} parent=43 // pred_check
          %p636 = pneg %p206
        $region54: #{tpu_custom_call.1} parent=43 // pred_check_branch
          %638 = sbr.rel (%p636) target = $region56
        $region55: #{tpu_custom_call.1} parent=43 // pred_region
          %s639 = smul.u32 2, %s26
          %s640 = ssub.s32 3, %s639
          %p641 = scmp.lt.s32.totalorder %s640, 2
          %s642 = scalar_select %p641, %s640, 2
          %s643 = smul.u32 128, %s642
          %s645 = ssub.s32 256, %s643
          %646 = vsyncadd %s610, %s645
          %p647 = scmp.ne.s32.totalorder 0, %s643
          %s648 = smul.addr %s639, 128
          %s649 = scalar_lea.hbm %s7, %s648
          %s650 = smul.u32 8, %s642
          %s651 = sshll.u32 %s613, 4
          %s652 = int_to_ptr.vmem [resolvable:$true] %s651
          %s653 = sshll.u32 %s650, 4
          %657 = dma.vmem_to_hbm [thread:$0]  (%p647), %s652, %s653, %s649, %s610, 128, 128, 8
        $region56: #{tpu_custom_call.1} parent=43 // pred_fallthru
          _
      $region44: #{tpu_custom_call.1} parent=5 // pred_fallthru
        _
      %p658 = scmp.le.s32.totalorder 2, %s21
      // Predicated region
      $region57: #{tpu_custom_call.1} parent=5 // pred_check
        %p659 = pneg %p658
      $region58: #{tpu_custom_call.1} parent=5 // pred_check_branch
        %661 = sbr.rel (%p659) target = $region60
      $region59: #{tpu_custom_call.1} parent=5 // pred_region
        %s662 = ssub.s32 %s21, 2
        // Predicated region
        $region61: #{tpu_custom_call.1} parent=59 // pred_check
          %p663 = pneg %p186
        $region62: #{tpu_custom_call.1} parent=59 // pred_check_branch
          %665 = sbr.rel (%p663) target = $region64
        $region63: #{tpu_custom_call.1} parent=59 // pred_region
          %s666 = sand.u32 %s171, 1
          %s667 = scalar_lea.sflag [#allocation3], %s666
          %s668 = sand.u32 %s171, 1
          %s669 = smul.addr %s668, 16
          %s670 = scalar_lea.vmem [#allocation5], %s669
          %671 = dma.done %s667, 256
        $region64: #{tpu_custom_call.1} parent=59 // pred_fallthru
          _
        // Predicated region
        $region65: #{tpu_custom_call.1} parent=59 // pred_check
          %p672 = pneg %p212
        $region66: #{tpu_custom_call.1} parent=59 // pred_check_branch
          %674 = sbr.rel (%p672) target = $region68
        $region67: #{tpu_custom_call.1} parent=59 // pred_region
          %s675 = sand.u32 %s197, 1
          %s676 = scalar_lea.sflag [#allocation7], %s675
          %s677 = sand.u32 %s197, 1
          %s678 = smul.addr %s677, 16
          %s679 = scalar_lea.vmem [#allocation6], %s678
          %680 = dma.done %s676, 256
        $region68: #{tpu_custom_call.1} parent=59 // pred_fallthru
          _
      $region60: #{tpu_custom_call.1} parent=5 // pred_fallthru
        _
    $region6: #{tpu_custom_call.1} parent=1 // loop_footer
      %s25 = sadd.s32 1, %s21
    $region7: #{tpu_custom_call.1} parent=1 // loop_footer_branch
      %20 = sbr.rel target = $region3
    $region8: #{tpu_custom_call.1} parent=1 // loop_exit
      _
    %681 = vsyncpa [#allocation3], 1
    %s682 = scalar_lea.sflag [#allocation3], 1
    %683 = vsyncpa %s682, 1
    %684 = vsyncpa [#allocation7], 1
    %s685 = scalar_lea.sflag [#allocation7], 1
    %686 = vsyncpa %s685, 1
    %687 = vsyncpa [#allocation4], 1
    %s688 = scalar_lea.sflag [#allocation4], 1
    %689 = vsyncpa %s688, 1

</llo_original>
